<compile_context>
chip_gen: v5e
topology: v5e:2x2
jax: 0.10.0
libtpu: 0.0.40
codegen_flags: <defaults>
</compile_context>

<pallas_src>
import functools

import jax
import jax.numpy as jnp
from jax.experimental import pallas as pl
from jax.experimental.pallas import tpu as pltpu


def conv_clip_kernel(x_ref, w_ref, b_ref, o_ref, *, kh, dil_row_stride, m,
                     clip_min, clip_max, use_bf16_operands):
    """One grid step = one batch image.

    x_ref : (1, KW*Cin, Hp*W1)   dw-stacked, spatially flattened input (VMEM)
    w_ref : (KH, Cout, KW*Cin)   per-row-tap weight matrices
    b_ref : (Cout, 1)            bias
    o_ref : (1, Cout, M)         M = H1*W1 flattened (stride-1) output
    """
    cout = o_ref.shape[1]

    # Bias folded into the accumulator init (single hoisted lane-broadcast).
    acc = jnp.broadcast_to(b_ref[...].astype(jnp.float32), (cout, m))

    # KH matmuls with K = KW*Cin.  Each RHS is a contiguous lane-window slice
    # of the pre-stacked input: no in-kernel reshape / strided gather.
    for dh in range(kh):
        off = dh * dil_row_stride
        lhs = w_ref[dh]                          # (Cout, KW*Cin)
        rhs = x_ref[0, :, off:off + m]           # (KW*Cin, M)
        if use_bf16_operands:
            # Optional bf16 MXU path for v6e/v7x (f32 accumulation kept);
            # off by default to preserve the 1e-4 comparison tolerance.
            lhs = lhs.astype(jnp.bfloat16)
            rhs = rhs.astype(jnp.bfloat16)
        acc = acc + jnp.dot(lhs, rhs, preferred_element_type=jnp.float32)

    acc = jnp.clip(acc, clip_min, clip_max)
    o_ref[0] = acc.astype(o_ref.dtype)


def net_clip_forward(x_nchw, weight_oihw, bias=None, *, stride=1,
                     padding=(1, 1), dilation=1, groups=1,
                     clip_min=-0.5, clip_max=0.5, use_bf16_operands=False):
    assert groups == 1  # TODO(synk): grouped convolution not implemented in the kernel
    n, cin, h, w = x_nchw.shape
    cout, _, kh, kw = weight_oihw.shape
    ph, pw = padding

    if bias is None:
        bias = jnp.zeros((cout,), x_nchw.dtype)

    # The kernel always computes the stride-1 output; stride > 1 is applied by
    # subsampling in the wrapper (correct; only wasteful when stride > 1).
    # TODO(synk): dedicated strided path if stride > 1 is ever hot.
    hp, wp = h + 2 * ph, w + 2 * pw
    h1 = hp - dilation * (kh - 1)          # stride-1 output height
    w1 = wp - dilation * (kw - 1)          # stride-1 output width
    m = h1 * w1

    # NCHW stays NCHW: spatial zero-pad only, no activation layout transpose.
    x_pad = jnp.pad(x_nchw, ((0, 0), (0, 0), (ph, ph), (pw, pw)))

    # dw-shifted stack: folds the KW taps into the matmul contraction dim.
    #   x_stack[n, dw*Cin + ci, hh*W1 + wo] = x_pad[n, ci, hh, wo + dw*dilation]
    cols = [jax.lax.slice_in_dim(x_pad, dw * dilation, dw * dilation + w1,
                                 axis=3) for dw in range(kw)]
    x_stack = jnp.stack(cols, axis=1).reshape(n, kw * cin, hp * w1)

    # Weights: (Cout, Cin, KH, KW) -> (KH, Cout, KW*Cin) so that
    #   w_r[dh][co, dw*Cin + ci] = weight[co, ci, dh, dw].
    w_r = jnp.transpose(weight_oihw, (2, 0, 3, 1)).reshape(kh, cout, kw * cin)
    b2 = bias.reshape(cout, 1)

    # Whole-image blocks are fine at these sizes.
    # TODO(synk): row-band tile (with a (kh-1)*dilation halo) for production
    # H/W so blocks fit v7x's smaller (64 MiB) VMEM.
    itemsize = jnp.dtype(x_nchw.dtype).itemsize
    block_bytes = 2 * (kw * cin * hp * w1 + cout * m) * itemsize  # double-buffered
    assert block_bytes < 32 * 1024 * 1024, "image block too large for VMEM"

    kernel = functools.partial(
        conv_clip_kernel, kh=kh, dil_row_stride=dilation * w1, m=m,
        clip_min=clip_min, clip_max=clip_max,
        use_bf16_operands=use_bf16_operands)

    out_flat = pl.pallas_call(
        kernel,
        out_shape=jax.ShapeDtypeStruct((n, cout, m), x_nchw.dtype),
        grid_spec=pltpu.PrefetchScalarGridSpec(
            num_scalar_prefetch=0,
            grid=(n,),
            in_specs=[
                pl.BlockSpec((1, kw * cin, hp * w1), lambda b: (b, 0, 0)),
                pl.BlockSpec((kh, cout, kw * cin), lambda b: (0, 0, 0)),
                pl.BlockSpec((cout, 1), lambda b: (0, 0)),
            ],
            out_specs=pl.BlockSpec((1, cout, m), lambda b: (b, 0, 0)),
        ),
        compiler_params=pltpu.CompilerParams(
            dimension_semantics=("parallel",)),
    )(x_stack, w_r, b2)

    # (N, Cout, M) -> (N, Cout, H1, W1) is metadata-only; then apply stride.
    out = out_flat.reshape(n, cout, h1, w1)
    if stride > 1:
        out = out[:, :, ::stride, ::stride]
    return out


if __name__ == "__main__":
    # Synthetic, deterministic parameters (mirrors NetClip.__init__ shapes).
    N, IC, H, W = 2, 4, 16, 16
    OC, KH, KW = 8, 3, 3
    STRIDE, PH, PW, DILATE, GROUPS = 1, 1, 1, 1, 1
    CLIP_MIN, CLIP_MAX = -0.5, 0.5

    key = jax.random.PRNGKey(0)
    kx, kw_, kb = jax.random.split(key, 3)
    x = jax.random.normal(kx, (N, IC, H, W), dtype=jnp.float32)          # NCHW
    weight = jax.random.normal(kw_, (OC, IC, KH, KW), dtype=jnp.float32) * 0.1
    bias = jax.random.normal(kb, (OC,), dtype=jnp.float32) * 0.1

    out = net_clip_forward(x, weight, bias, stride=STRIDE, padding=(PH, PW),
                           dilation=DILATE, groups=GROUPS,
                           clip_min=CLIP_MIN, clip_max=CLIP_MAX)
    out = jax.block_until_ready(out)

    # Sanity check vs XLA reference conv + clip.
    ref = jax.lax.conv_general_dilated(
        x, weight, window_strides=(STRIDE, STRIDE),
        padding=((PH, PH), (PW, PW)),
        rhs_dilation=(DILATE, DILATE),
        dimension_numbers=("NCHW", "OIHW", "NCHW"),
        feature_group_count=GROUPS)
    ref = jnp.clip(ref + bias[None, :, None, None], CLIP_MIN, CLIP_MAX)

    assert out.shape == ref.shape, (out.shape, ref.shape)
    assert jnp.allclose(out, ref, atol=1e-4, rtol=1e-4), float(
        jnp.max(jnp.abs(out - ref)))
    print("KERNEL_OK")
</pallas_src>

<mosaic_0001>
module attributes {stable_mosaic.version = 11 : i64} {
  func.func @conv_clip_kernel(%arg0: i32, %arg1: memref<1x12x288xf32, #tpu.memory_space<vmem>>, %arg2: memref<3x8x12xf32, #tpu.memory_space<vmem>>, %arg3: memref<8x1xf32, #tpu.memory_space<vmem>>, %arg4: memref<1x8x256xf32, #tpu.memory_space<vmem>>) attributes {dimension_semantics = [#tpu.dimension_semantics<parallel>], iteration_bounds = array<i64: 2>, scalar_prefetch = 0 : i64, scratch_operands = 0 : i64, tpu.core_type = #tpu.core_type<tc>, window_params = [{transform_indices = @transform_0, window_bounds = array<i64: 1, 12, 288>}, {pipeline_mode = #tpu.pipeline_mode<synchronous>, transform_indices = @transform_1, window_bounds = array<i64: 3, 8, 12>}, {pipeline_mode = #tpu.pipeline_mode<synchronous>, transform_indices = @transform_2, window_bounds = array<i64: 8, 1>}, {transform_indices = @transform_3, window_bounds = array<i64: 1, 8, 256>}]} {
    %c0 = arith.constant 0 : index
    %c0_0 = arith.constant 0 : index
    %0 = vector.load %arg3[%c0, %c0_0] : memref<8x1xf32, #tpu.memory_space<vmem>>, vector<8x1xf32>
    %1 = vector.shape_cast %0 : vector<8x1xf32> to vector<8x1xf32>
    %2 = vector.broadcast %1 : vector<8x1xf32> to vector<8x256xf32>
    %c0_1 = arith.constant 0 : index
    %c0_2 = arith.constant 0 : index
    %c0_3 = arith.constant 0 : index
    %3 = vector.load %arg2[%c0_1, %c0_2, %c0_3] : memref<3x8x12xf32, #tpu.memory_space<vmem>>, vector<1x8x12xf32>
    %4 = vector.shape_cast %3 : vector<1x8x12xf32> to vector<8x12xf32>
    %c0_4 = arith.constant 0 : index
    %c0_5 = arith.constant 0 : index
    %c0_6 = arith.constant 0 : index
    %5 = vector.load %arg1[%c0_4, %c0_5, %c0_6] : memref<1x12x288xf32, #tpu.memory_space<vmem>>, vector<1x12x256xf32>
    %6 = vector.shape_cast %5 : vector<1x12x256xf32> to vector<12x256xf32>
    %cst = arith.constant dense<0.000000e+00> : vector<8x256xf32>
    %7 = tpu.matmul %4, %6, %cst {dimension_numbers = #tpu.dot_dimension_numbers<[1], [0], [0], [1], [0, 0, 1, 1], [], []>} : vector<8x12xf32>, vector<12x256xf32>, vector<8x256xf32> -> vector<8x256xf32>
    %8 = arith.addf %2, %7 : vector<8x256xf32>
    %c1 = arith.constant 1 : index
    %c0_7 = arith.constant 0 : index
    %c0_8 = arith.constant 0 : index
    %9 = vector.load %arg2[%c1, %c0_7, %c0_8] : memref<3x8x12xf32, #tpu.memory_space<vmem>>, vector<1x8x12xf32>
    %10 = vector.shape_cast %9 : vector<1x8x12xf32> to vector<8x12xf32>
    %c0_9 = arith.constant 0 : index
    %c0_10 = arith.constant 0 : index
    %c16 = arith.constant 16 : index
    %11 = vector.load %arg1[%c0_9, %c0_10, %c16] : memref<1x12x288xf32, #tpu.memory_space<vmem>>, vector<1x12x256xf32>
    %12 = vector.shape_cast %11 : vector<1x12x256xf32> to vector<12x256xf32>
    %cst_11 = arith.constant dense<0.000000e+00> : vector<8x256xf32>
    %13 = tpu.matmul %10, %12, %cst_11 {dimension_numbers = #tpu.dot_dimension_numbers<[1], [0], [0], [1], [0, 0, 1, 1], [], []>} : vector<8x12xf32>, vector<12x256xf32>, vector<8x256xf32> -> vector<8x256xf32>
    %14 = arith.addf %8, %13 : vector<8x256xf32>
    %c2 = arith.constant 2 : index
    %c0_12 = arith.constant 0 : index
    %c0_13 = arith.constant 0 : index
    %15 = vector.load %arg2[%c2, %c0_12, %c0_13] : memref<3x8x12xf32, #tpu.memory_space<vmem>>, vector<1x8x12xf32>
    %16 = vector.shape_cast %15 : vector<1x8x12xf32> to vector<8x12xf32>
    %c0_14 = arith.constant 0 : index
    %c0_15 = arith.constant 0 : index
    %c32 = arith.constant 32 : index
    %17 = vector.load %arg1[%c0_14, %c0_15, %c32] : memref<1x12x288xf32, #tpu.memory_space<vmem>>, vector<1x12x256xf32>
    %18 = vector.shape_cast %17 : vector<1x12x256xf32> to vector<12x256xf32>
    %cst_16 = arith.constant dense<0.000000e+00> : vector<8x256xf32>
    %19 = tpu.matmul %16, %18, %cst_16 {dimension_numbers = #tpu.dot_dimension_numbers<[1], [0], [0], [1], [0, 0, 1, 1], [], []>} : vector<8x12xf32>, vector<12x256xf32>, vector<8x256xf32> -> vector<8x256xf32>
    %20 = arith.addf %14, %19 : vector<8x256xf32>
    %cst_17 = arith.constant -5.000000e-01 : f32
    %cst_18 = arith.constant 5.000000e-01 : f32
    %21 = vector.broadcast %cst_17 : f32 to vector<8x256xf32>
    %22 = arith.maximumf %21, %20 : vector<8x256xf32>
    %23 = vector.broadcast %cst_18 : f32 to vector<8x256xf32>
    %24 = arith.minimumf %23, %22 : vector<8x256xf32>
    %c0_19 = arith.constant 0 : index
    %c0_20 = arith.constant 0 : index
    %c0_21 = arith.constant 0 : index
    %25 = vector.load %arg4[%c0_19, %c0_20, %c0_21] : memref<1x8x256xf32, #tpu.memory_space<vmem>>, vector<1x8x256xf32>
    %26 = vector.shape_cast %25 : vector<1x8x256xf32> to vector<8x256xf32>
    %27 = vector.shape_cast %24 : vector<8x256xf32> to vector<1x8x256xf32>
    tpu.vector_store %arg4[%c0_19, %c0_20, %c0_21], %27 {strides = array<i32>} : memref<1x8x256xf32, #tpu.memory_space<vmem>>, vector<1x8x256xf32>,
    return
  }
  func.func @transform_0(%arg0: i32) -> (i32, i32, i32) {
    %c0_i32 = arith.constant 0 : i32
    %c0_i32_0 = arith.constant 0 : i32
    %c0_i32_1 = arith.constant 0 : i32
    return %arg0, %c0_i32, %c0_i32_0 : i32, i32, i32
  }
  func.func @transform_1(%arg0: i32) -> (i32, i32, i32) {
    %c0_i32 = arith.constant 0 : i32
    %c0_i32_0 = arith.constant 0 : i32
    %c0_i32_1 = arith.constant 0 : i32
    %c0_i32_2 = arith.constant 0 : i32
    return %c0_i32, %c0_i32_0, %c0_i32_1 : i32, i32, i32
  }
  func.func @transform_2(%arg0: i32) -> (i32, i32) {
    %c0_i32 = arith.constant 0 : i32
    %c0_i32_0 = arith.constant 0 : i32
    %c0_i32_1 = arith.constant 0 : i32
    return %c0_i32, %c0_i32_0 : i32, i32
  }
  func.func @transform_3(%arg0: i32) -> (i32, i32, i32) {
    %c0_i32 = arith.constant 0 : i32
    %c0_i32_0 = arith.constant 0 : i32
    %c0_i32_1 = arith.constant 0 : i32
    return %arg0, %c0_i32, %c0_i32_0 : i32, i32, i32
  }
}

</mosaic_0001>

<llo_original>
// kernel: tpu_custom_call.1
$region0: #{tpu_custom_call.1}
  #allocation0 [shape = 'u32[]', space=smem, size = 0x4, offset = 0x4, fixed_abs, tag = 'smem constant byte address 0x4 - core index']
  #allocation1 [shape = 'u32[72,128]{1,0:T(1,128)}', space=vmem, size = 0x9000, scoped, tag = 'internal scratch']
  %s0 = inlined_call_operand.vmem [shape: f32[2,12,288], index: 0, kind: input, shape index: {}]
  %s1 = inlined_call_operand.vmem [shape: f32[3,8,12], index: 1, kind: input, shape index: {}]
  %s2 = inlined_call_operand.vmem [shape: f32[8,1], index: 2, kind: input, shape index: {}]
  %s3 = inlined_call_operand.hbm [shape: f32[2,8,256], index: 3, kind: output, shape index: {}]
  %s4 = sld [smem:[#allocation0]]
  $region45: #{tpu_custom_call.1} parent=0
    _
  %s6 = ssub.s32 1, %s4
  %s7 = scalar_select 0, %s6, %s4
  $region1: #{tpu_custom_call.1} parent=0
    #allocation2 [shape = 'u8[16384]{0}', space=vmem, size = 0x4000, scoped, tag = 'output window, operand 0']
    #allocation3 [shape = 's32[2]{0}', space=sflag, size = 0x8, scoped, tag = 'scoped memory for tpu_custom_call.1']
    %8 = vsyncpa [#allocation3], 0
    %s9 = scalar_lea.sflag [#allocation3], 1
    %10 = vsyncpa %s9, 0
    loop: start=0, step=1, limit=4
    $region2: #{tpu_custom_call.1} parent=1 // loop_pre_header
      _
    $region3: #{tpu_custom_call.1} parent=1 // loop_header
      %s12 = sphi 0, %s16
      %p13 = scmp.ge.s32.totalorder %s12, 4
      %s22 = sphi 0, %s24
      %s25 = sphi 0, %s22
      %s26 = sphi 0, %s25
      %s42 = sphi 0, %s26
      %s46 = sphi 0, %s46
      %s48 = sphi 0, %s46
      %s49 = sphi 0, %s48
      %s63 = sphi 0, %s49
      %s67 = sphi 0, %s67
      %s69 = sphi 0, %s67
      %s70 = sphi 0, %s69
      %s84 = sphi 0, %s70
      %s90 = sphi 0, %s92
      %s93 = sphi 0, %s90
      %s94 = sphi 0, %s93
      %s110 = sphi 0, %s94
    $region4: #{tpu_custom_call.1} parent=1 // loop_header_branch
      %15 = sbr.rel (%p13) target = $region8
    $region5: #{tpu_custom_call.1} parent=1 // loop_body
      %s17 = ssub.s32 %s12, 1
      %s18 = ssub.s32 %s12, 2
      %s19 = sadd.s32 %s12, 1
      %s20 = ssub.s32 %s12, %s19
      %p21 = scmp.eq.s32.totalorder %s20, 0
      %s23 = sadd.s32 %s22, 1
      %s24 = scalar_select %p21, %s22, %s23
      %p27 = pneg %p21
      %p28 = scmp.eq.s32.totalorder %s12, 1
      %p29 = por %p27, %p28
      %p30 = scmp.ne.s32.totalorder %s22, %s25
      %p31 = scmp.eq.s32.totalorder %s12, 0
      %p32 = por %p30, %p31
      %p33 = scmp.ne.s32.totalorder %s22, %s25
      %p34 = scmp.eq.s32.totalorder %s17, 1
      %p35 = por %p33, %p34
      %p36 = scmp.ne.s32.totalorder %s25, %s26
      %p37 = scmp.eq.s32.totalorder %s17, 0
      %p38 = por %p36, %p37
      %p39 = scmp.ne.s32.totalorder %s25, %s26
      %p40 = scmp.eq.s32.totalorder %s18, 1
      %p41 = por %p39, %p40
      %p43 = scmp.ne.s32.totalorder %s26, %s42
      %p44 = scmp.eq.s32.totalorder %s18, 0
      %p45 = por %p43, %p44
      %s47 = sadd.s32 %s46, 1
      %p50 = scmp.eq.s32.totalorder %s12, 1
      %p51 = scmp.ne.s32.totalorder %s46, %s48
      %p52 = scmp.eq.s32.totalorder %s12, 0
      %p53 = por %p51, %p52
      %p54 = scmp.ne.s32.totalorder %s46, %s48
      %p55 = scmp.eq.s32.totalorder %s17, 1
      %p56 = por %p54, %p55
      %p57 = scmp.ne.s32.totalorder %s48, %s49
      %p58 = scmp.eq.s32.totalorder %s17, 0
      %p59 = por %p57, %p58
      %p60 = scmp.ne.s32.totalorder %s48, %s49
      %p61 = scmp.eq.s32.totalorder %s18, 1
      %p62 = por %p60, %p61
      %p64 = scmp.ne.s32.totalorder %s49, %s63
      %p65 = scmp.eq.s32.totalorder %s18, 0
      %p66 = por %p64, %p65
      %s68 = sadd.s32 %s67, 1
      %p71 = scmp.eq.s32.totalorder %s12, 1
      %p72 = scmp.ne.s32.totalorder %s67, %s69
      %p73 = scmp.eq.s32.totalorder %s12, 0
      %p74 = por %p72, %p73
      %p75 = scmp.ne.s32.totalorder %s67, %s69
      %p76 = scmp.eq.s32.totalorder %s17, 1
      %p77 = por %p75, %p76
      %p78 = scmp.ne.s32.totalorder %s69, %s70
      %p79 = scmp.eq.s32.totalorder %s17, 0
      %p80 = por %p78, %p79
      %p81 = scmp.ne.s32.totalorder %s69, %s70
      %p82 = scmp.eq.s32.totalorder %s18, 1
      %p83 = por %p81, %p82
      %p85 = scmp.ne.s32.totalorder %s70, %s84
      %p86 = scmp.eq.s32.totalorder %s18, 0
      %p87 = por %p85, %p86
      %s88 = ssub.s32 %s12, %s19
      %p89 = scmp.eq.s32.totalorder %s88, 0
      %s91 = sadd.s32 %s90, 1
      %s92 = scalar_select %p89, %s90, %s91
      %p95 = pneg %p89
      %p96 = scmp.eq.s32.totalorder %s12, 1
      %p97 = por %p95, %p96
      %p98 = scmp.ne.s32.totalorder %s90, %s93
      %p99 = scmp.eq.s32.totalorder %s12, 0
      %p100 = por %p98, %p99
      %p101 = scmp.ne.s32.totalorder %s90, %s93
      %p102 = scmp.eq.s32.totalorder %s17, 1
      %p103 = por %p101, %p102
      %p104 = scmp.ne.s32.totalorder %s93, %s94
      %p105 = scmp.eq.s32.totalorder %s17, 0
      %p106 = por %p104, %p105
      %p107 = scmp.ne.s32.totalorder %s93, %s94
      %p108 = scmp.eq.s32.totalorder %s18, 1
      %p109 = por %p107, %p108
      %p111 = scmp.ne.s32.totalorder %s94, %s110
      %p112 = scmp.eq.s32.totalorder %s18, 0
      %p113 = por %p111, %p112
      %p114 = scmp.le.s32.totalorder 1, %s12
      %p115 = scmp.lt.s32.totalorder %s12, 3
      %p116 = pnand %p114, %p115
      %p117 = pneg %p116
      // Predicated region
      $region9: #{tpu_custom_call.1} parent=5 // pred_check
        _
      $region10: #{tpu_custom_call.1} parent=5 // pred_check_branch
        %119 = sbr.rel (%p116) target = $region12
      $region11: #{tpu_custom_call.1} parent=5 // pred_region
        %s120 = ssub.s32 %s12, 1
        // Predicated region
        $region13: #{tpu_custom_call.1} parent=11 // pred_check
          %p121 = pneg %p59
        $region14: #{tpu_custom_call.1} parent=11 // pred_check_branch
          %123 = sbr.rel (%p121) target = $region16
        $region15: #{tpu_custom_call.1} parent=11 // pred_region
          _
        $region16: #{tpu_custom_call.1} parent=11 // pred_fallthru
          _
        // Predicated region
        $region17: #{tpu_custom_call.1} parent=11 // pred_check
          %p124 = pneg %p80
        $region18: #{tpu_custom_call.1} parent=11 // pred_check_branch
          %126 = sbr.rel (%p124) target = $region20
        $region19: #{tpu_custom_call.1} parent=11 // pred_region
          _
        $region20: #{tpu_custom_call.1} parent=11 // pred_fallthru
          _
      $region12: #{tpu_custom_call.1} parent=5 // pred_fallthru
        _
      %p127 = scmp.lt.s32.totalorder %s12, 2
      // Predicated region
      $region21: #{tpu_custom_call.1} parent=5 // pred_check
        %p128 = pneg %p127
      $region22: #{tpu_custom_call.1} parent=5 // pred_check_branch
        %130 = sbr.rel (%p128) target = $region24
      $region23: #{tpu_custom_call.1} parent=5 // pred_region
        // Predicated region
        $region25: #{tpu_custom_call.1} parent=23 // pred_check
          %p131 = pneg %p32
        $region26: #{tpu_custom_call.1} parent=23 // pred_check_branch
          %133 = sbr.rel (%p131) target = $region28
        $region27: #{tpu_custom_call.1} parent=23 // pred_region
          %p134 = scmp.lt.s32.totalorder %s12, 1
          %s135 = scalar_select %p134, %s12, 1
          %s136 = smul.addr %s135, 6
          %s137 = smul.addr %s136, 8
          %s138 = scalar_lea.vmem %s0, %s137
        $region28: #{tpu_custom_call.1} parent=23 // pred_fallthru
          _
      $region24: #{tpu_custom_call.1} parent=5 // pred_fallthru
        _
      %p139 = scmp.le.s32.totalorder 1, %s12
      %p140 = scmp.lt.s32.totalorder %s12, 3
      %p141 = pnand %p139, %p140
      %p142 = pneg %p141
      // Predicated region
      $region29: #{tpu_custom_call.1} parent=5 // pred_check
        _
      $region30: #{tpu_custom_call.1} parent=5 // pred_check_branch
        %144 = sbr.rel (%p141) target = $region32
      $region31: #{tpu_custom_call.1} parent=5 // pred_region
        %s145 = ssub.s32 %s12, 1
        %p146 = scmp.lt.s32.totalorder %s17, 1
        %s147 = scalar_select %p146, %s17, 1
        %s148 = smul.addr %s147, 6
        %s149 = smul.addr %s148, 8
        %s150 = scalar_lea.vmem %s0, %s149
        %p151 = pneg %p38
        %p152 = pneg %p35
        %p153 = pneg %p59
        %p154 = pneg %p56
        %p155 = pneg %p80
        %p156 = pneg %p77
        %p157 = pneg %p106
        %p158 = pneg %p103
        %s159 = sand.u32 %s93, 1
        %s160 = scalar_lea.sflag [#allocation3], %s159
        %s161 = sand.u32 %s93, 1
        %s162 = smul.addr %s161, 16
        %s163 = scalar_lea.vmem [#allocation2], %s162
        %p164 = scmp.lt.s32.totalorder %s17, 1
        %s165 = scalar_select %p164, %s17, 1
        %s166 = smul.addr %s165, 6
        %s167 = smul.addr %s166, 8
        %s168 = scalar_lea.vmem %s0, %s167
        %v169 = vld [vmem:[%s2] sm:$0xff]
        %171 = vset.pattern.permute.xlu0 0
        %172 = vperm.xlu0 %171, %v169
        %v173 = vpop.permute.xlu0 %172
        %v175 = vld [vmem:[%s1] sm:$0xff]
        %v176 = vld [vmem:[%s168] sm:$0xff]
        %v177 = vld [vmem:[%s168 + $0x8] sm:$0xff]
        %v178 = vld [vmem:[%s168 + $0x18] sm:$0xf]
        %v179 = vld [vmem:[%s168 + $0x20] sm:$0xf]
        %vm180 = vcmask 97280
        %v182 = vsel %vm180, %v175, 0
        %vm184 = vcmask 1043456
        %v186 = vsel %vm184, %v178, 0
        %v189 = vsel %vm184, %v179, 0
        %191 = vmatpush.msra.mxu0 0.0
        %192 = vmatpush.msra.mxu0 0.0
        %193 = vmatpush.msra.mxu0 0.0
        %194 = vmatpush.msra.mxu0 0.0
        %195 = vmatpush.msra.mxu0 0.0
        %196 = vmatpush.msra.mxu0 0.0
        %197 = vmatpush.msra.mxu0 0.0
        %198 = vmatpush.msra.mxu0 0.0
        %199 = vmatpush.msra.mxu0 0.0
        %200 = vmatpush.msra.mxu0 0.0
        %201 = vmatpush.msra.mxu0 0.0
        %202 = vmatpush.msra.mxu0 0.0
        %203 = vmatpush.msra.mxu0 0.0
        %204 = vmatpush.msra.mxu0 0.0
        %205 = vmatpush.msra.mxu0 %v186
        %206 = vmatpush.msra.mxu0 %v176
        %207 = vmatmul.f32.gmra.mxu0 %v182
        %v208 = vpop.f32.mrf.mxu0
        %v209 = vadd.f32 0.0, %v208
        %210 = vdwg.mxu0
        %211 = vmatpush.msra.mxu0 0.0
        %212 = vmatpush.msra.mxu0 0.0
        %213 = vmatpush.msra.mxu0 0.0
        %214 = vmatpush.msra.mxu0 0.0
        %215 = vmatpush.msra.mxu0 0.0
        %216 = vmatpush.msra.mxu0 0.0
        %217 = vmatpush.msra.mxu0 0.0
        %218 = vmatpush.msra.mxu0 0.0
        %219 = vmatpush.msra.mxu0 0.0
        %220 = vmatpush.msra.mxu0 0.0
        %221 = vmatpush.msra.mxu0 0.0
        %222 = vmatpush.msra.mxu0 0.0
        %223 = vmatpush.msra.mxu0 0.0
        %224 = vmatpush.msra.mxu0 0.0
        %225 = vmatpush.msra.mxu0 %v189
        %226 = vmatpush.msra.mxu0 %v177
        %227 = vmatmul.f32.gmra.mxu0 %v182
        %v228 = vpop.f32.mrf.mxu0
        %v229 = vadd.f32 0.0, %v228
        %230 = vdwg.mxu0
        %v231 = vadd.f32 %v173, %v209
        %v232 = vadd.f32 %v173, %v229
        %s233 = scalar_lea.vmem %s1, 8
        %v234 = vld [vmem:[%s233] sm:$0xff]
        %v235 = vld [vmem:[%s168] sm:$0xff]
        %v236 = vld [vmem:[%s168 + $0x8] sm:$0xff]
        %v237 = vld [vmem:[%s168 + $0x10] sm:$0xff]
        %v238 = vld [vmem:[%s168 + $0x18] sm:$0xf]
        %v239 = vld [vmem:[%s168 + $0x20] sm:$0xf]
        %v240 = vld [vmem:[%s168 + $0x28] sm:$0xf]
        %247 = vrot.lane.b32.xlu0 %v235, 112
        %v248 = vpop.permute.xlu0 %247
        %249 = vrot.lane.b32.xlu0 %v236, 112
        %v250 = vpop.permute.xlu0 %249
        %251 = vrot.lane.b32.xlu0 %v237, 112
        %v252 = vpop.permute.xlu0 %251
        %253 = vrot.lane.b32.xlu0 %v238, 112
        %v254 = vpop.permute.xlu0 %253
        %255 = vrot.lane.b32.xlu0 %v239, 112
        %v256 = vpop.permute.xlu0 %255
        %257 = vrot.lane.b32.xlu0 %v240, 112
        %v258 = vpop.permute.xlu0 %257
        %vm259 = vcmask 916480
        %v260 = vsel %vm259, %v248, %v250
        %v261 = vsel %vm259, %v250, %v252
        %v262 = vsel %vm259, %v254, %v256
        %v263 = vsel %vm259, %v256, %v258
        %v267 = vsel %vm180, %v234, 0
        %v269 = vsel %vm184, %v262, 0
        %v271 = vsel %vm184, %v263, 0
        %273 = vmatpush.msra.mxu0 0.0
        %274 = vmatpush.msra.mxu0 0.0
        %275 = vmatpush.msra.mxu0 0.0
        %276 = vmatpush.msra.mxu0 0.0
        %277 = vmatpush.msra.mxu0 0.0
        %278 = vmatpush.msra.mxu0 0.0
        %279 = vmatpush.msra.mxu0 0.0
        %280 = vmatpush.msra.mxu0 0.0
        %281 = vmatpush.msra.mxu0 0.0
        %282 = vmatpush.msra.mxu0 0.0
        %283 = vmatpush.msra.mxu0 0.0
        %284 = vmatpush.msra.mxu0 0.0
        %285 = vmatpush.msra.mxu0 0.0
        %286 = vmatpush.msra.mxu0 0.0
        %287 = vmatpush.msra.mxu0 %v269
        %288 = vmatpush.msra.mxu0 %v260
        %289 = vmatmul.f32.gmra.mxu0 %v267
        %v290 = vpop.f32.mrf.mxu0
        %v291 = vadd.f32 0.0, %v290
        %292 = vdwg.mxu0
        %293 = vmatpush.msra.mxu0 0.0
        %294 = vmatpush.msra.mxu0 0.0
        %295 = vmatpush.msra.mxu0 0.0
        %296 = vmatpush.msra.mxu0 0.0
        %297 = vmatpush.msra.mxu0 0.0
        %298 = vmatpush.msra.mxu0 0.0
        %299 = vmatpush.msra.mxu0 0.0
        %300 = vmatpush.msra.mxu0 0.0
        %301 = vmatpush.msra.mxu0 0.0
        %302 = vmatpush.msra.mxu0 0.0
        %303 = vmatpush.msra.mxu0 0.0
        %304 = vmatpush.msra.mxu0 0.0
        %305 = vmatpush.msra.mxu0 0.0
        %306 = vmatpush.msra.mxu0 0.0
        %307 = vmatpush.msra.mxu0 %v271
        %308 = vmatpush.msra.mxu0 %v261
        %309 = vmatmul.f32.gmra.mxu0 %v267
        %v310 = vpop.f32.mrf.mxu0
        %v311 = vadd.f32 0.0, %v310
        %312 = vdwg.mxu0
        %v313 = vadd.f32 %v231, %v291
        %v314 = vadd.f32 %v232, %v311
        %s315 = scalar_lea.vmem %s1, 16
        %v316 = vld [vmem:[%s315] sm:$0xff]
        %317 = vrot.lane.b32.xlu0 %v235, 96
        %v318 = vpop.permute.xlu0 %317
        %319 = vrot.lane.b32.xlu0 %v236, 96
        %v320 = vpop.permute.xlu0 %319
        %321 = vrot.lane.b32.xlu0 %v237, 96
        %v322 = vpop.permute.xlu0 %321
        %323 = vrot.lane.b32.xlu0 %v238, 96
        %v324 = vpop.permute.xlu0 %323
        %325 = vrot.lane.b32.xlu0 %v239, 96
        %v326 = vpop.permute.xlu0 %325
        %327 = vrot.lane.b32.xlu0 %v240, 96
        %v328 = vpop.permute.xlu0 %327
        %vm329 = vcmask 785408
        %v330 = vsel %vm329, %v318, %v320
        %v331 = vsel %vm329, %v320, %v322
        %v332 = vsel %vm329, %v324, %v326
        %v333 = vsel %vm329, %v326, %v328
        %v337 = vsel %vm180, %v316, 0
        %v339 = vsel %vm184, %v332, 0
        %v341 = vsel %vm184, %v333, 0
        %343 = vmatpush.msra.mxu0 0.0
        %344 = vmatpush.msra.mxu0 0.0
        %345 = vmatpush.msra.mxu0 0.0
        %346 = vmatpush.msra.mxu0 0.0
        %347 = vmatpush.msra.mxu0 0.0
        %348 = vmatpush.msra.mxu0 0.0
        %349 = vmatpush.msra.mxu0 0.0
        %350 = vmatpush.msra.mxu0 0.0
        %351 = vmatpush.msra.mxu0 0.0
        %352 = vmatpush.msra.mxu0 0.0
        %353 = vmatpush.msra.mxu0 0.0
        %354 = vmatpush.msra.mxu0 0.0
        %355 = vmatpush.msra.mxu0 0.0
        %356 = vmatpush.msra.mxu0 0.0
        %357 = vmatpush.msra.mxu0 %v339
        %358 = vmatpush.msra.mxu0 %v330
        %359 = vmatmul.f32.gmra.mxu0 %v337
        %v360 = vpop.f32.mrf.mxu0
        %v361 = vadd.f32 0.0, %v360
        %362 = vdwg.mxu0
        %363 = vmatpush.msra.mxu0 0.0
        %364 = vmatpush.msra.mxu0 0.0
        %365 = vmatpush.msra.mxu0 0.0
        %366 = vmatpush.msra.mxu0 0.0
        %367 = vmatpush.msra.mxu0 0.0
        %368 = vmatpush.msra.mxu0 0.0
        %369 = vmatpush.msra.mxu0 0.0
        %370 = vmatpush.msra.mxu0 0.0
        %371 = vmatpush.msra.mxu0 0.0
        %372 = vmatpush.msra.mxu0 0.0
        %373 = vmatpush.msra.mxu0 0.0
        %374 = vmatpush.msra.mxu0 0.0
        %375 = vmatpush.msra.mxu0 0.0
        %376 = vmatpush.msra.mxu0 0.0
        %377 = vmatpush.msra.mxu0 %v341
        %378 = vmatpush.msra.mxu0 %v331
        %379 = vmatmul.f32.gmra.mxu0 %v337
        %v380 = vpop.f32.mrf.mxu0
        %v381 = vadd.f32 0.0, %v380
        %382 = vdwg.mxu0
        %v383 = vadd.f32 %v313, %v361
        %v384 = vadd.f32 %v314, %v381
        %v385 = vmax.f32 %v383, -0.5
        %v386 = vmax.f32 %v384, -0.5
        %v387 = vmin.f32 %v385, 0.5
        %v388 = vmin.f32 %v386, 0.5
        %389 = vst [vmem:[%s163] sm:$0xff] %v387
        %390 = vst [vmem:[%s163 + $0x8] sm:$0xff] %v388
        %s391 = sand.u32 %s93, 1
        %s392 = scalar_lea.sflag [#allocation3], %s391
        %s393 = sand.u32 %s93, 1
        %s394 = smul.addr %s393, 16
        %s395 = scalar_lea.vmem [#allocation2], %s394
        // Predicated region
        $region33: #{tpu_custom_call.1} parent=31 // pred_check
          %p396 = pneg %p103
        $region34: #{tpu_custom_call.1} parent=31 // pred_check_branch
          %398 = sbr.rel (%p396) target = $region36
        $region35: #{tpu_custom_call.1} parent=31 // pred_region
          %400 = vsyncadd %s392, 0
          %s401 = smul.addr %s17, 2
          %s402 = smul.addr %s401, 8
          %s403 = scalar_lea.hbm %s3, %s402
          %s405 = sshll.u32 %s395, 4
          %s406 = int_to_ptr.vmem [resolvable:$true] %s405
          %s407 = sshll.u32 %s403, 4
          %s408 = int_to_ptr.hbm [resolvable:$true] %s407
          %410 = dma.vmem_to_hbm [thread:$0]  %s406, 256, %s408, %s392
        $region36: #{tpu_custom_call.1} parent=31 // pred_fallthru
          _
      $region32: #{tpu_custom_call.1} parent=5 // pred_fallthru
        _
      %p411 = scmp.le.s32.totalorder 2, %s12
      // Predicated region
      $region37: #{tpu_custom_call.1} parent=5 // pred_check
        %p412 = pneg %p411
      $region38: #{tpu_custom_call.1} parent=5 // pred_check_branch
        %414 = sbr.rel (%p412) target = $region40
      $region39: #{tpu_custom_call.1} parent=5 // pred_region
        %s415 = ssub.s32 %s12, 2
        // Predicated region
        $region41: #{tpu_custom_call.1} parent=39 // pred_check
          %p416 = pneg %p109
        $region42: #{tpu_custom_call.1} parent=39 // pred_check_branch
          %418 = sbr.rel (%p416) target = $region44
        $region43: #{tpu_custom_call.1} parent=39 // pred_region
          %s419 = sand.u32 %s94, 1
          %s420 = scalar_lea.sflag [#allocation3], %s419
          %s421 = sand.u32 %s94, 1
          %s422 = smul.addr %s421, 16
          %s423 = scalar_lea.vmem [#allocation2], %s422
          %425 = dma.done %s420, 256
        $region44: #{tpu_custom_call.1} parent=39 // pred_fallthru
          _
      $region40: #{tpu_custom_call.1} parent=5 // pred_fallthru
        _
    $region6: #{tpu_custom_call.1} parent=1 // loop_footer
      %s16 = sadd.s32 1, %s12
    $region7: #{tpu_custom_call.1} parent=1 // loop_footer_branch
      %11 = sbr.rel target = $region3
    $region8: #{tpu_custom_call.1} parent=1 // loop_exit
      _
    %426 = vsyncpa [#allocation3], 1
    %s427 = scalar_lea.sflag [#allocation3], 1
    %428 = vsyncpa %s427, 1

</llo_original>
